<compile_context>
chip_gen: v7x
topology: tpu7x:2x2x1
jax: 0.10.0
libtpu: 0.0.40
codegen_flags: <defaults>
</compile_context>

<pallas_src>
import functools

import jax
import jax.numpy as jnp
from jax.experimental import pallas as pl
from jax.experimental.pallas import tpu as pltpu

_LANES = 128
_SUBLANES = 8


# ----------------------------------------------------------------------------
# Kernels
# ----------------------------------------------------------------------------
def _critic_loss_single_kernel(q_ref, r_ref, out_ref, *, inv_m):
    """Single-shot: whole sublane-dense (rows, 128) operands resident in VMEM."""
    q = q_ref[...].astype(jnp.float32)          # in-vreg widening cast (free)
    r = r_ref[...].astype(jnp.float32)
    # q^2 - 2*r*q == q * (q - 2*r): one fewer full-tile VPU multiply.
    val = q * (q - 2.0 * r)
    # inv_m is 1/true-M (compile-time const); zero padding adds 0 to the sum.
    out_ref[0, 0] = jnp.abs(jnp.sum(val) * inv_m)


def _critic_loss_grid_kernel(q_ref, r_ref, out_ref, acc_ref, *, inv_m):
    """Pipelined gridded reduction over row-chunks for large inputs."""
    i = pl.program_id(0)

    @pl.when(i == 0)
    def _init():
        acc_ref[...] = jnp.zeros_like(acc_ref)

    q = q_ref[...].astype(jnp.float32)          # (block_rows, 128)
    r = r_ref[...].astype(jnp.float32)
    val = q * (q - 2.0 * r)                     # VPU elementwise

    # Fold the block into the (8,128) accumulator with vreg-wise VPU adds so
    # the inner loop is pure VPU + DMA (no XLU cross-lane reduce per step).
    br = val.shape[0]
    acc_ref[...] += jnp.sum(
        val.reshape(br // _SUBLANES, _SUBLANES, _LANES), axis=0)

    @pl.when(i == pl.num_programs(0) - 1)
    def _finalize():
        out_ref[0, 0] = jnp.abs(jnp.sum(acc_ref[...]) * inv_m)


# ----------------------------------------------------------------------------
# Wrapper
# ----------------------------------------------------------------------------
def _flatten_pad_2d(x, padded_rows):
    """Flatten x, zero-pad to padded_rows*128 elements, reshape lane-dense."""
    flat = x.reshape(-1)
    pad = padded_rows * _LANES - flat.shape[0]
    if pad:
        flat = jnp.pad(flat, (0, pad))          # zeros: exact for q*(q-2r)
    return flat.reshape(padded_rows, _LANES)


def critic_loss(q_eval, reward, *, block_rows=1024, single_shot_max_rows=4096):
    """Pallas implementation of Critic_loss.forward.

    block_rows:            row-chunk for the gridded path.  1024 f32 rows =
                           0.5 MiB/input/buffer (safe under v5e's 16 MiB
                           scoped VMEM); raise to 2048-4096 on v6e/v7x for
                           fewer grid steps.
    single_shot_max_rows:  inputs with <= this many 128-lane rows use the
                           no-grid path (<= ~2 MiB/input in VMEM).
    """
    m = q_eval.size
    assert reward.size == m, (
        "q_eval and reward must flatten to the same number of elements")
    inv_m = 1.0 / m                              # true-M divisor (pre-padding)
    rows = -(-m // _LANES)                       # ceil(M / 128)

    if rows <= single_shot_max_rows:
        q2 = _flatten_pad_2d(q_eval, rows)
        r2 = _flatten_pad_2d(reward, rows)
        out = pl.pallas_call(
            functools.partial(_critic_loss_single_kernel, inv_m=inv_m),
            out_shape=jax.ShapeDtypeStruct((1, 1), jnp.float32),
            in_specs=[
                pl.BlockSpec(memory_space=pltpu.MemorySpace.VMEM),
                pl.BlockSpec(memory_space=pltpu.MemorySpace.VMEM),
            ],
            out_specs=pl.BlockSpec(memory_space=pltpu.MemorySpace.SMEM),
        )(q2, r2)
        return out[0, 0]

    # Large-M path: pipelined 1-D gridded reduction.
    assert block_rows % _SUBLANES == 0, "block_rows must be a multiple of 8"
    num_blocks = -(-rows // block_rows)
    padded_rows = num_blocks * block_rows
    q2 = _flatten_pad_2d(q_eval, padded_rows)
    r2 = _flatten_pad_2d(reward, padded_rows)

    # NOTE: on v7x a leading size-2 "parallel" grid axis (half the rows per
    # TensorCore, partials combined in the wrapper) would use both TCs; kept
    # single-core here for simplicity/portability.
    out = pl.pallas_call(
        functools.partial(_critic_loss_grid_kernel, inv_m=inv_m),
        out_shape=jax.ShapeDtypeStruct((1, 1), jnp.float32),
        grid=(num_blocks,),
        in_specs=[
            pl.BlockSpec((block_rows, _LANES), lambda i: (i, 0)),
            pl.BlockSpec((block_rows, _LANES), lambda i: (i, 0)),
        ],
        out_specs=pl.BlockSpec((1, 1), lambda i: (0, 0),
                               memory_space=pltpu.MemorySpace.SMEM),
        scratch_shapes=[pltpu.VMEM((_SUBLANES, _LANES), jnp.float32)],
        compiler_params=pltpu.CompilerParams(
            dimension_semantics=("arbitrary",)),
    )(q2, r2)
    return out[0, 0]


def critic_loss_ref(q_eval, reward):
    """Pure-JAX transcription of the PyTorch forward (for verification)."""
    q = q_eval.reshape(-1).astype(jnp.float32)
    r = reward.reshape(-1).astype(jnp.float32)
    t = q ** 2
    k = r * q
    return jnp.abs(jnp.mean(t - 2.0 * k))


if __name__ == "__main__":
    key = jax.random.PRNGKey(0)
    k1, k2, k3, k4, k5, k6 = jax.random.split(key, 6)

    # A2C critic: one value estimate per sample; batch = 128 -> exactly one
    # lane-dense (1, 128) vreg row; single-shot (no-grid) path.
    BATCH = 128
    q_eval = jax.random.normal(k1, (BATCH, 1), dtype=jnp.float32)
    reward = jax.random.normal(k2, (BATCH,), dtype=jnp.float32)
    loss = jax.block_until_ready(critic_loss(q_eval, reward))
    ref = critic_loss_ref(q_eval, reward)
    assert jnp.allclose(loss, ref, rtol=1e-5, atol=1e-6), (loss, ref)

    # Ragged size + bf16 inputs: exercises zero-padding, true-M divisor and
    # the in-kernel upcast (native dtype crosses the pallas_call boundary).
    M2 = 200
    q2 = jax.random.normal(k3, (M2, 1), dtype=jnp.bfloat16)
    r2 = jax.random.normal(k4, (M2,), dtype=jnp.bfloat16)
    loss2 = jax.block_until_ready(critic_loss(q2, r2))
    ref2 = critic_loss_ref(q2, r2)
    assert jnp.allclose(loss2, ref2, rtol=1e-4, atol=1e-5), (loss2, ref2)

    # Forced gridded-reduction path (tiny blocks so the test stays small).
    M3 = 3 * 64 * 128 + 37
    q3 = jax.random.normal(k5, (M3,), dtype=jnp.float32)
    r3 = jax.random.normal(k6, (M3,), dtype=jnp.float32)
    loss3 = jax.block_until_ready(
        critic_loss(q3, r3, block_rows=64, single_shot_max_rows=0))
    ref3 = critic_loss_ref(q3, r3)
    assert jnp.allclose(loss3, ref3, rtol=1e-3, atol=1e-5), (loss3, ref3)

    print("KERNEL_OK")
</pallas_src>

<mosaic_0001>
module attributes {stable_mosaic.version = 11 : i64} {
  func.func @_critic_loss_single_kernel(%arg0: memref<1x128xf32, #tpu.memory_space<vmem>>, %arg1: memref<1x128xf32, #tpu.memory_space<vmem>>, %arg2: memref<1x1xf32, #tpu.memory_space<smem>>) attributes {dimension_semantics = [], scalar_prefetch = 0 : i64, scratch_operands = 0 : i64, tpu.core_type = #tpu.core_type<tc>} {
    %c0 = arith.constant 0 : index
    %c0_0 = arith.constant 0 : index
    %0 = vector.load %arg0[%c0, %c0_0] : memref<1x128xf32, #tpu.memory_space<vmem>>, vector<1x128xf32>
    %c0_1 = arith.constant 0 : index
    %c0_2 = arith.constant 0 : index
    %1 = vector.load %arg1[%c0_1, %c0_2] : memref<1x128xf32, #tpu.memory_space<vmem>>, vector<1x128xf32>
    %cst = arith.constant 2.000000e+00 : f32
    %2 = vector.broadcast %cst : f32 to vector<1x128xf32>
    %3 = arith.mulf %2, %1 : vector<1x128xf32>
    %4 = arith.subf %0, %3 : vector<1x128xf32>
    %5 = arith.mulf %0, %4 : vector<1x128xf32>
    %6 = vector.shape_cast %5 : vector<1x128xf32> to vector<1x1x128xf32>
    %cst_3 = arith.constant dense<0.000000e+00> : vector<1xf32>
    %7 = vector.multi_reduction <add>, %6, %cst_3 [1, 2] : vector<1x1x128xf32> to vector<1xf32>
    %8 = vector.shape_cast %7 : vector<1xf32> to vector<1x1x1xf32>
    %9 = vector.extract %8[0, 0, 0] : f32 from vector<1x1x1xf32>
    %cst_4 = arith.constant 7.812500e-03 : f32
    %10 = arith.mulf %9, %cst_4 : f32
    %11 = math.absf %10 : f32
    %c0_5 = arith.constant 0 : index
    %c0_6 = arith.constant 0 : index
    %12 = memref.load %arg2[%c0_5, %c0_6] : memref<1x1xf32, #tpu.memory_space<smem>>
    memref.store %11, %arg2[%c0_5, %c0_6] : memref<1x1xf32, #tpu.memory_space<smem>>
    return
  }
}

</mosaic_0001>

<llo_original>
// kernel: tpu_custom_call.1
$region0: #{tpu_custom_call.1}
  #allocation0 [shape = 'u32[]', space=smem, size = 0x4, offset = 0x4, fixed_abs, tag = 'smem constant byte address 0x4 - core index']
  #allocation1 [shape = 'u32[144,128]{1,0:T(1,128)}', space=vmem, size = 0x12000, scoped, tag = 'internal scratch']
  %s0 = inlined_call_operand.hbm [shape: f32[1,128], index: 0, kind: input, shape index: {}]
  %s1 = inlined_call_operand.vmem [shape: f32[1,128], index: 1, kind: input, shape index: {}]
  %s2 = inlined_call_operand.hbm [shape: f32[1,1], index: 2, kind: output, shape index: {}]
  %s3 = sld [smem:[#allocation0]]
  $region22: #{tpu_custom_call.1} parent=0
    _
  %s5 = ssub.s32 1, %s3
  %s6 = scalar_select 0, %s5, %s3
  $region1: #{tpu_custom_call.1} parent=0
    #allocation2 [shape = 'u8[512]{0}', space=vmem, size = 0x400, scoped, tag = 'input window, operand 0, single buffered']
    #allocation3 [shape = 's32[1]{0}', space=sflag, size = 0x4, scoped, tag = 'scoped memory for tpu_custom_call.1']
    #allocation4 [shape = 's32[1]{0}', space=sflag, size = 0x4, scoped, tag = 'scoped memory for tpu_custom_call.1']
    #allocation5 [shape = 'u8[512]{0}', space=smem, size = 0x200, scoped, tag = 'output window, operand 0, single buffered']
    %7 = vsyncpa [#allocation3], 0
    %8 = vsyncpa [#allocation4], 0
    // Predicated region
    $region2: #{tpu_custom_call.1} parent=1 // pred_check
      _
    $region3: #{tpu_custom_call.1} parent=1 // pred_check_branch
      %10 = sbr.rel (0) target = $region5
    $region4: #{tpu_custom_call.1} parent=1 // pred_region
      %s12 = ssub.s32 16, 16
      %13 = vsyncadd [#allocation3], %s12
      %s15 = sshll.u32 [#allocation2], 4
      %s16 = int_to_ptr.vmem [resolvable:$true] %s15
      %18 = dma.hbm_to_vmem [thread:$0]  %s0, 16, %s16, [#allocation3]
    $region5: #{tpu_custom_call.1} parent=1 // pred_fallthru
      _
    // Predicated region
    $region6: #{tpu_custom_call.1} parent=1 // pred_check
      _
    $region7: #{tpu_custom_call.1} parent=1 // pred_check_branch
      %20 = sbr.rel (0) target = $region9
    $region8: #{tpu_custom_call.1} parent=1 // pred_region
      _
    $region9: #{tpu_custom_call.1} parent=1 // pred_fallthru
      _
    // Predicated region
    $region10: #{tpu_custom_call.1} parent=1 // pred_check
      _
    $region11: #{tpu_custom_call.1} parent=1 // pred_check_branch
      %22 = sbr.rel (0) target = $region13
    $region12: #{tpu_custom_call.1} parent=1 // pred_region
      %23 = dma.done [#allocation3], 16
    $region13: #{tpu_custom_call.1} parent=1 // pred_fallthru
      _
    %v24 = vld [vmem:[#allocation2] sm:$0x1]
    %v25 = vld [vmem:[%s1] sm:$0x1]
    %v26 = vmul.f32 %v25, 2.0
    %v27 = vsub.f32 %v24, %v26
    %v28 = vmul.f32 %v24, %v27
    %vm29 = vcmask 1040384
    %v30 = vsel %vm29, %v28, 0.0
    %31 = vadd.xlane.f32.xlu0 %v30
    %v32 = vpop.xlane.xlu0 %31
    %v33 = vrot.slane %v32, 4
    %v34 = vadd.f32 %v32, %v33
    %v35 = vrot.slane %v34, 2
    %v36 = vadd.f32 %v34, %v35
    %v37 = vrot.slane %v36, 1
    %v38 = vadd.f32 %v36, %v37
    %s39 = vtos %v38
    %s40 = smul.f32 %s39, 0.0078125
    %s41 = sand.u32 2147483647, %s40
    %s42 = scalar_lea.smem [#allocation5], 0
    %43 = sst [smem:[%s42]] %s41
    // Predicated region
    $region14: #{tpu_custom_call.1} parent=1 // pred_check
      _
    $region15: #{tpu_custom_call.1} parent=1 // pred_check_branch
      %45 = sbr.rel (0) target = $region17
    $region16: #{tpu_custom_call.1} parent=1 // pred_region
      %s47 = ssub.s32 16, 16
      %48 = vsyncadd [#allocation4], %s47
      %51 = dma.smem_to_hbm [#allocation5], 16, %s2, [#allocation4]
    $region17: #{tpu_custom_call.1} parent=1 // pred_fallthru
      _
    // Predicated region
    $region18: #{tpu_custom_call.1} parent=1 // pred_check
      _
    $region19: #{tpu_custom_call.1} parent=1 // pred_check_branch
      %53 = sbr.rel (0) target = $region21
    $region20: #{tpu_custom_call.1} parent=1 // pred_region
      %54 = dma.done [#allocation4], 16
    $region21: #{tpu_custom_call.1} parent=1 // pred_fallthru
      _
    %55 = sfence
    %56 = vsyncpa [#allocation3], 1
    %57 = vsyncpa [#allocation4], 1

</llo_original>
